<compile_context>
chip_gen: v5e
topology: v5e:2x2
jax: 0.10.0
libtpu: 0.0.40
codegen_flags: <defaults>
</compile_context>

<pallas_src>
import functools

import jax
import jax.numpy as jnp
from jax.experimental import pallas as pl
from jax.experimental.pallas import tpu as pltpu


def _auto_disc_kernel(v_ref, w1_ref, b1_ref, w2c_ref, b2_ref, lut_ref, out_ref):
    # v_ref:    (TN, 1)    f32
    # w1_ref:   (1, NB)    f32   linear1.weight^T  (1 -> num_bins)
    # b1_ref:   (1, NB)    f32
    # w2c_ref:  (NB, NB)   bf16  linear2.weight^T + alpha * I   (residual folded)
    # b2_ref:   (1, NB)    f32
    # lut_ref:  (NB, ED)   bf16
    # out_ref:  (TN, ED)   f32
    v = v_ref[...]                                        # (TN, 1)

    # linear1: in_features == 1 -> broadcast multiply + bias
    v1 = v * w1_ref[...] + b1_ref[...]                    # (TN, NB)

    # LeakyReLU (negative_slope = 0.01): mul + max (no compare/select)
    v2 = jnp.maximum(v1, 0.01 * v1)

    # linear2 + alpha * v2, with the residual folded into w2c's diagonal.
    # bf16 MXU operands, f32 accumulation.
    v3 = (jnp.dot(v2.astype(jnp.bfloat16), w2c_ref[...],
                  preferred_element_type=jnp.float32)
          + b2_ref[...])                                  # (TN, NB) f32

    # softmax along the bins axis, with deferred normalization: compute the
    # unnormalized probabilities, matmul with the lut, then scale the narrow
    # (TN, ED) f32 accumulator by 1/denom.
    m = jnp.max(v3, axis=-1, keepdims=True)
    p = jnp.exp(v3 - m)                                   # (TN, NB) f32
    denom = jnp.sum(p, axis=-1, keepdims=True)            # (TN, 1)  f32

    e = jnp.dot(p.astype(jnp.bfloat16), lut_ref[...],
                preferred_element_type=jnp.float32)       # (TN, ED) f32
    e = e * pl.reciprocal(denom, approx=True)             # deferred normalize
    out_ref[...] = e.astype(out_ref.dtype)


def _round_up(x, m):
    return ((x + m - 1) // m) * m


def _vmem_budget_bytes(tile, num_bins, emb_dim):
    """Generous estimate of per-step VMEM need, capped for v7x headroom."""
    lane = 128
    nb_pad = _round_up(num_bins, lane)
    ed_pad = _round_up(emb_dim, lane)
    io = 2 * (tile * lane * 4 + tile * ed_pad * 4)      # v + out blocks, 2-buffered
    wts = 2 * (3 * 8 * nb_pad * 4                        # w1 / b1 / b2 (padded)
               + num_bins * nb_pad * 2                   # w2c bf16
               + num_bins * ed_pad * 2)                  # lut bf16
    tmp = 10 * tile * nb_pad * 4                         # live f32 temporaries
    budget = io + wts + tmp + (4 << 20)                  # + headroom
    return max(16 << 20, min(budget, 48 << 20))


@functools.partial(jax.jit, static_argnames=("tile_n",))
def auto_discretization(v, w1_t, b1, w2_t, b2, alpha, lut, *, tile_n=4096):
    """v: (..., 1) float32 -> (..., embedding_dim) float32."""
    orig_shape = v.shape
    assert orig_shape[-1] == 1, "last dim of v must be 1"
    n = 1
    for d in orig_shape[:-1]:
        n *= d

    num_bins = w1_t.shape[1]
    emb_dim = lut.shape[1]

    # Effective row tile: at most tile_n, sublane-aligned (multiple of 8), no
    # larger than the (rounded-up) row count so small inputs don't over-pad.
    tile = min(tile_n, max(8, _round_up(n, 8)))
    # For mid/large N, cap the tile so the grid has >= 2 "parallel" steps
    # (keeps both TensorCores busy on v7x; negligible cost on v5e/v6e).
    if n >= 256:
        tile = min(tile, _round_up(-(-n // 2), 8))
    tile = max(8, _round_up(tile, 8))
    n_pad = _round_up(n, tile)

    v2d = v.reshape(n, 1).astype(jnp.float32)
    if n_pad != n:
        v2d = jnp.pad(v2d, ((0, n_pad - n), (0, 0)))

    w1_2d = w1_t.reshape(1, num_bins).astype(jnp.float32)
    b1_2d = b1.reshape(1, num_bins).astype(jnp.float32)
    # Fold the alpha residual into linear2's (transposed) weight diagonal.
    alpha_s = alpha.reshape(()).astype(jnp.float32)
    w2c = (w2_t.astype(jnp.float32)
           + alpha_s * jnp.eye(num_bins, dtype=jnp.float32))
    w2c_bf = w2c.astype(jnp.bfloat16)           # bf16 MXU operand
    b2_2d = b2.reshape(1, num_bins).astype(jnp.float32)
    lut_bf = lut.astype(jnp.bfloat16)           # bf16 MXU operand

    grid = (n_pad // tile,)

    out = pl.pallas_call(
        _auto_disc_kernel,
        out_shape=jax.ShapeDtypeStruct((n_pad, emb_dim), jnp.float32),
        grid_spec=pltpu.PrefetchScalarGridSpec(
            num_scalar_prefetch=0,
            grid=grid,
            in_specs=[
                pl.BlockSpec((tile, 1), lambda i: (i, 0)),            # v
                pl.BlockSpec((1, num_bins), lambda i: (0, 0)),        # w1^T
                pl.BlockSpec((1, num_bins), lambda i: (0, 0)),        # b1
                pl.BlockSpec((num_bins, num_bins), lambda i: (0, 0)), # w2^T+aI (bf16)
                pl.BlockSpec((1, num_bins), lambda i: (0, 0)),        # b2
                pl.BlockSpec((num_bins, emb_dim), lambda i: (0, 0)),  # lut (bf16)
            ],
            out_specs=pl.BlockSpec((tile, emb_dim), lambda i: (i, 0)),
        ),
        compiler_params=pltpu.CompilerParams(
            dimension_semantics=("parallel",),
            vmem_limit_bytes=_vmem_budget_bytes(tile, num_bins, emb_dim)),
    )(v2d, w1_2d, b1_2d, w2c_bf, b2_2d, lut_bf)

    if n_pad != n:
        out = out[:n]
    return out.reshape(orig_shape[:-1] + (emb_dim,))


def _reference(v, w1_t, b1, w2_t, b2, alpha, lut):
    """Plain-JAX f32 reference mirroring the PyTorch forward."""
    v1 = v @ w1_t + b1                                   # linear1
    v2 = jnp.where(v1 >= 0, v1, 0.01 * v1)               # leaky_relu
    v3 = v2 @ w2_t + b2 + alpha * v2                     # linear2 + alpha*v2
    v4 = jax.nn.softmax(v3, axis=-1)
    return v4 @ lut


if __name__ == "__main__":
    # Small sizes consistent with the module:
    #   embedding_dim=64, num_bins=128, input v of shape (B, S, 1).
    embedding_dim = 64
    num_bins = 128
    B, S = 2, 250                     # N = 500 rows -> exercises padding + 2-step grid

    key = jax.random.PRNGKey(0)
    kv, k1w, k1b, k2w, k2b, ka, kl = jax.random.split(key, 7)

    v = jax.random.normal(kv, (B, S, 1), dtype=jnp.float32)

    # Deterministic parameter init (shapes match nn.Linear / nn.Parameter).
    w1 = jax.random.uniform(k1w, (num_bins, 1), jnp.float32, -1.0, 1.0)      # linear1.weight
    b1 = jax.random.uniform(k1b, (num_bins,), jnp.float32, -1.0, 1.0)        # linear1.bias
    w2 = jax.random.uniform(k2w, (num_bins, num_bins), jnp.float32,
                            -0.1, 0.1)                                       # linear2.weight
    b2 = jax.random.uniform(k2b, (num_bins,), jnp.float32, -0.1, 0.1)        # linear2.bias
    alpha = jax.random.uniform(ka, (1,), jnp.float32)                        # alpha
    lut = jax.random.uniform(kl, (num_bins, embedding_dim), jnp.float32)     # lut

    # Pre-transpose Linear weights to (in_features, out_features).
    w1_t = w1.T            # (1, num_bins)
    w2_t = w2.T            # (num_bins, num_bins)

    ref = _reference(v, w1_t, b1, w2_t, b2, alpha[0], lut)

    # 1) default large-tile path (splits into 2 parallel grid steps here)
    out = auto_discretization(v, w1_t, b1, w2_t, b2, alpha, lut)
    out = jax.block_until_ready(out)
    assert out.shape == (B, S, embedding_dim)
    err = float(jnp.max(jnp.abs(out - ref)))
    assert err < 5e-2, f"mismatch vs reference (default tile), max abs err {err}"

    # 2) small-tile path (multi-step grid + row padding)
    out2 = auto_discretization(v, w1_t, b1, w2_t, b2, alpha, lut, tile_n=128)
    out2 = jax.block_until_ready(out2)
    err2 = float(jnp.max(jnp.abs(out2 - ref)))
    assert err2 < 5e-2, f"mismatch vs reference (tiled), max abs err {err2}"

    print("KERNEL_OK")
</pallas_src>

<mosaic_0001>
module attributes {stable_mosaic.version = 11 : i64} {
  func.func @_auto_disc_kernel(%arg0: i32, %arg1: memref<256x1xf32, #tpu.memory_space<vmem>>, %arg2: memref<1x128xf32, #tpu.memory_space<vmem>>, %arg3: memref<1x128xf32, #tpu.memory_space<vmem>>, %arg4: memref<128x128xbf16, #tpu.memory_space<vmem>>, %arg5: memref<1x128xf32, #tpu.memory_space<vmem>>, %arg6: memref<128x64xbf16, #tpu.memory_space<vmem>>, %arg7: memref<256x64xf32, #tpu.memory_space<vmem>>) attributes {dimension_semantics = [#tpu.dimension_semantics<parallel>], iteration_bounds = array<i64: 2>, scalar_prefetch = 0 : i64, scratch_operands = 0 : i64, tpu.core_type = #tpu.core_type<tc>, window_params = [{transform_indices = @transform_0, window_bounds = array<i64: 256, 1>}, {pipeline_mode = #tpu.pipeline_mode<synchronous>, transform_indices = @transform_1, window_bounds = array<i64: 1, 128>}, {pipeline_mode = #tpu.pipeline_mode<synchronous>, transform_indices = @transform_2, window_bounds = array<i64: 1, 128>}, {pipeline_mode = #tpu.pipeline_mode<synchronous>, transform_indices = @transform_3, window_bounds = array<i64: 128, 128>}, {pipeline_mode = #tpu.pipeline_mode<synchronous>, transform_indices = @transform_4, window_bounds = array<i64: 1, 128>}, {pipeline_mode = #tpu.pipeline_mode<synchronous>, transform_indices = @transform_5, window_bounds = array<i64: 128, 64>}, {transform_indices = @transform_6, window_bounds = array<i64: 256, 64>}]} {
    %c0 = arith.constant 0 : index
    %c0_0 = arith.constant 0 : index
    %0 = vector.load %arg1[%c0, %c0_0] : memref<256x1xf32, #tpu.memory_space<vmem>>, vector<256x1xf32>
    %c0_1 = arith.constant 0 : index
    %c0_2 = arith.constant 0 : index
    %1 = vector.load %arg2[%c0_1, %c0_2] : memref<1x128xf32, #tpu.memory_space<vmem>>, vector<1x128xf32>
    %2 = vector.broadcast %0 : vector<256x1xf32> to vector<256x128xf32>
    %3 = vector.broadcast %1 : vector<1x128xf32> to vector<256x128xf32>
    %4 = arith.mulf %2, %3 : vector<256x128xf32>
    %c0_3 = arith.constant 0 : index
    %c0_4 = arith.constant 0 : index
    %5 = vector.load %arg3[%c0_3, %c0_4] : memref<1x128xf32, #tpu.memory_space<vmem>>, vector<1x128xf32>
    %6 = vector.broadcast %5 : vector<1x128xf32> to vector<256x128xf32>
    %7 = arith.addf %4, %6 : vector<256x128xf32>
    %cst = arith.constant 0.00999999977 : f32
    %8 = vector.broadcast %cst : f32 to vector<256x128xf32>
    %9 = arith.mulf %8, %7 : vector<256x128xf32>
    %10 = arith.maximumf %7, %9 : vector<256x128xf32>
    %11 = arith.truncf %10 : vector<256x128xf32> to vector<256x128xbf16>
    %c0_5 = arith.constant 0 : index
    %c0_6 = arith.constant 0 : index
    %12 = vector.load %arg4[%c0_5, %c0_6] : memref<128x128xbf16, #tpu.memory_space<vmem>>, vector<128x128xbf16>
    %cst_7 = arith.constant dense<0.000000e+00> : vector<256x128xf32>
    %13 = tpu.matmul %11, %12, %cst_7 {dimension_numbers = #tpu.dot_dimension_numbers<[1], [0], [0], [1], [0, 0, 1, 1], [], []>} : vector<256x128xbf16>, vector<128x128xbf16>, vector<256x128xf32> -> vector<256x128xf32>
    %c0_8 = arith.constant 0 : index
    %c0_9 = arith.constant 0 : index
    %14 = vector.load %arg5[%c0_8, %c0_9] : memref<1x128xf32, #tpu.memory_space<vmem>>, vector<1x128xf32>
    %15 = vector.broadcast %14 : vector<1x128xf32> to vector<256x128xf32>
    %16 = arith.addf %13, %15 : vector<256x128xf32>
    %cst_10 = arith.constant dense<0xFF800000> : vector<256xf32>
    %17 = vector.multi_reduction <maximumf>, %16, %cst_10 [1] : vector<256x128xf32> to vector<256xf32>
    %18 = vector.shape_cast %17 : vector<256xf32> to vector<256x1xf32>
    %19 = vector.broadcast %18 : vector<256x1xf32> to vector<256x128xf32>
    %20 = arith.subf %16, %19 : vector<256x128xf32>
    %21 = math.exp %20 : vector<256x128xf32>
    %cst_11 = arith.constant dense<0.000000e+00> : vector<256xf32>
    %22 = vector.multi_reduction <add>, %21, %cst_11 [1] : vector<256x128xf32> to vector<256xf32>
    %23 = vector.shape_cast %22 : vector<256xf32> to vector<256x1xf32>
    %24 = arith.truncf %21 : vector<256x128xf32> to vector<256x128xbf16>
    %c0_12 = arith.constant 0 : index
    %c0_13 = arith.constant 0 : index
    %25 = vector.load %arg6[%c0_12, %c0_13] : memref<128x64xbf16, #tpu.memory_space<vmem>>, vector<128x64xbf16>
    %cst_14 = arith.constant dense<0.000000e+00> : vector<256x64xf32>
    %26 = tpu.matmul %24, %25, %cst_14 {dimension_numbers = #tpu.dot_dimension_numbers<[1], [0], [0], [1], [0, 0, 1, 1], [], []>} : vector<256x128xbf16>, vector<128x64xbf16>, vector<256x64xf32> -> vector<256x64xf32>
    %27 = tpu.reciprocal %23 {approx = true} : vector<256x1xf32> -> vector<256x1xf32>
    %28 = vector.broadcast %27 : vector<256x1xf32> to vector<256x64xf32>
    %29 = arith.mulf %26, %28 : vector<256x64xf32>
    %c0_15 = arith.constant 0 : index
    %c0_16 = arith.constant 0 : index
    %30 = vector.load %arg7[%c0_15, %c0_16] : memref<256x64xf32, #tpu.memory_space<vmem>>, vector<256x64xf32>
    tpu.vector_store %arg7[%c0_15, %c0_16], %29 {strides = array<i32>} : memref<256x64xf32, #tpu.memory_space<vmem>>, vector<256x64xf32>,
    return
  }
  func.func @transform_0(%arg0: i32) -> (i32, i32) {
    %c0_i32 = arith.constant 0 : i32
    %c0_i32_0 = arith.constant 0 : i32
    return %arg0, %c0_i32 : i32, i32
  }
  func.func @transform_1(%arg0: i32) -> (i32, i32) {
    %c0_i32 = arith.constant 0 : i32
    %c0_i32_0 = arith.constant 0 : i32
    %c0_i32_1 = arith.constant 0 : i32
    return %c0_i32, %c0_i32_0 : i32, i32
  }
  func.func @transform_2(%arg0: i32) -> (i32, i32) {
    %c0_i32 = arith.constant 0 : i32
    %c0_i32_0 = arith.constant 0 : i32
    %c0_i32_1 = arith.constant 0 : i32
    return %c0_i32, %c0_i32_0 : i32, i32
  }
  func.func @transform_3(%arg0: i32) -> (i32, i32) {
    %c0_i32 = arith.constant 0 : i32
    %c0_i32_0 = arith.constant 0 : i32
    %c0_i32_1 = arith.constant 0 : i32
    return %c0_i32, %c0_i32_0 : i32, i32
  }
  func.func @transform_4(%arg0: i32) -> (i32, i32) {
    %c0_i32 = arith.constant 0 : i32
    %c0_i32_0 = arith.constant 0 : i32
    %c0_i32_1 = arith.constant 0 : i32
    return %c0_i32, %c0_i32_0 : i32, i32
  }
  func.func @transform_5(%arg0: i32) -> (i32, i32) {
    %c0_i32 = arith.constant 0 : i32
    %c0_i32_0 = arith.constant 0 : i32
    %c0_i32_1 = arith.constant 0 : i32
    return %c0_i32, %c0_i32_0 : i32, i32
  }
  func.func @transform_6(%arg0: i32) -> (i32, i32) {
    %c0_i32 = arith.constant 0 : i32
    %c0_i32_0 = arith.constant 0 : i32
    return %arg0, %c0_i32 : i32, i32
  }
}

</mosaic_0001>

<llo_original>
// kernel: auto_discretization.1
$region0: #{auto_discretization.1}
  #allocation0 [shape = 'u32[]', space=smem, size = 0x4, offset = 0x4, fixed_abs, tag = 'smem constant byte address 0x4 - core index']
  #allocation1 [shape = 'u32[72,128]{1,0:T(1,128)}', space=vmem, size = 0x9000, scoped, tag = 'internal scratch']
  %s0 = inlined_call_operand.vmem [shape: f32[512,1], index: 0, kind: input, shape index: {}]
  %s1 = inlined_call_operand.vmem [shape: f32[1,128], index: 1, kind: input, shape index: {}]
  %s2 = inlined_call_operand.vmem [shape: f32[1,128], index: 2, kind: input, shape index: {}]
  %s3 = inlined_call_operand.vmem [shape: bf16[128,128], index: 3, kind: input, shape index: {}]
  %s4 = inlined_call_operand.vmem [shape: f32[1,128], index: 4, kind: input, shape index: {}]
  %s5 = inlined_call_operand.vmem [shape: bf16[128,64], index: 5, kind: input, shape index: {}]
  %s6 = inlined_call_operand.vmem [shape: f32[512,64], index: 6, kind: output, shape index: {}]
  %s7 = sld [smem:[#allocation0]]
  $region57: #{auto_discretization.1} parent=0
    _
  %s9 = ssub.s32 1, %s7
  %s10 = scalar_select 0, %s9, %s7
  loop: start=0, step=1, limit=4
  $region2: #{auto_discretization.1} parent=0 // loop_pre_header
    _
  $region3: #{auto_discretization.1} parent=0 // loop_header
    %s12 = sphi 0, %s16
    %p13 = scmp.ge.s32.totalorder %s12, 4
    %s22 = sphi 0, %s24
    %s25 = sphi 0, %s22
    %s26 = sphi 0, %s25
    %s42 = sphi 0, %s26
    %s46 = sphi 0, %s46
    %s48 = sphi 0, %s46
    %s49 = sphi 0, %s48
    %s63 = sphi 0, %s49
    %s67 = sphi 0, %s67
    %s69 = sphi 0, %s67
    %s70 = sphi 0, %s69
    %s84 = sphi 0, %s70
    %s88 = sphi 0, %s88
    %s90 = sphi 0, %s88
    %s91 = sphi 0, %s90
    %s105 = sphi 0, %s91
    %s109 = sphi 0, %s109
    %s111 = sphi 0, %s109
    %s112 = sphi 0, %s111
    %s126 = sphi 0, %s112
    %s130 = sphi 0, %s130
    %s132 = sphi 0, %s130
    %s133 = sphi 0, %s132
    %s147 = sphi 0, %s133
    %s153 = sphi 0, %s155
    %s156 = sphi 0, %s153
    %s157 = sphi 0, %s156
    %s173 = sphi 0, %s157
  $region4: #{auto_discretization.1} parent=0 // loop_header_branch
    %15 = sbr.rel (%p13) target = $region8
  $region5: #{auto_discretization.1} parent=0 // loop_body
    %s17 = ssub.s32 %s12, 1
    %s18 = ssub.s32 %s12, 2
    %s19 = sadd.s32 %s12, 1
    %s20 = ssub.s32 %s12, %s19
    %p21 = scmp.eq.s32.totalorder %s20, 0
    %s23 = sadd.s32 %s22, 1
    %s24 = scalar_select %p21, %s22, %s23
    %p27 = pneg %p21
    %p28 = scmp.eq.s32.totalorder %s12, 1
    %p29 = por %p27, %p28
    %p30 = scmp.ne.s32.totalorder %s22, %s25
    %p31 = scmp.eq.s32.totalorder %s12, 0
    %p32 = por %p30, %p31
    %p33 = scmp.ne.s32.totalorder %s22, %s25
    %p34 = scmp.eq.s32.totalorder %s17, 1
    %p35 = por %p33, %p34
    %p36 = scmp.ne.s32.totalorder %s25, %s26
    %p37 = scmp.eq.s32.totalorder %s17, 0
    %p38 = por %p36, %p37
    %p39 = scmp.ne.s32.totalorder %s25, %s26
    %p40 = scmp.eq.s32.totalorder %s18, 1
    %p41 = por %p39, %p40
    %p43 = scmp.ne.s32.totalorder %s26, %s42
    %p44 = scmp.eq.s32.totalorder %s18, 0
    %p45 = por %p43, %p44
    %s47 = sadd.s32 %s46, 1
    %p50 = scmp.eq.s32.totalorder %s12, 1
    %p51 = scmp.ne.s32.totalorder %s46, %s48
    %p52 = scmp.eq.s32.totalorder %s12, 0
    %p53 = por %p51, %p52
    %p54 = scmp.ne.s32.totalorder %s46, %s48
    %p55 = scmp.eq.s32.totalorder %s17, 1
    %p56 = por %p54, %p55
    %p57 = scmp.ne.s32.totalorder %s48, %s49
    %p58 = scmp.eq.s32.totalorder %s17, 0
    %p59 = por %p57, %p58
    %p60 = scmp.ne.s32.totalorder %s48, %s49
    %p61 = scmp.eq.s32.totalorder %s18, 1
    %p62 = por %p60, %p61
    %p64 = scmp.ne.s32.totalorder %s49, %s63
    %p65 = scmp.eq.s32.totalorder %s18, 0
    %p66 = por %p64, %p65
    %s68 = sadd.s32 %s67, 1
    %p71 = scmp.eq.s32.totalorder %s12, 1
    %p72 = scmp.ne.s32.totalorder %s67, %s69
    %p73 = scmp.eq.s32.totalorder %s12, 0
    %p74 = por %p72, %p73
    %p75 = scmp.ne.s32.totalorder %s67, %s69
    %p76 = scmp.eq.s32.totalorder %s17, 1
    %p77 = por %p75, %p76
    %p78 = scmp.ne.s32.totalorder %s69, %s70
    %p79 = scmp.eq.s32.totalorder %s17, 0
    %p80 = por %p78, %p79
    %p81 = scmp.ne.s32.totalorder %s69, %s70
    %p82 = scmp.eq.s32.totalorder %s18, 1
    %p83 = por %p81, %p82
    %p85 = scmp.ne.s32.totalorder %s70, %s84
    %p86 = scmp.eq.s32.totalorder %s18, 0
    %p87 = por %p85, %p86
    %s89 = sadd.s32 %s88, 1
    %p92 = scmp.eq.s32.totalorder %s12, 1
    %p93 = scmp.ne.s32.totalorder %s88, %s90
    %p94 = scmp.eq.s32.totalorder %s12, 0
    %p95 = por %p93, %p94
    %p96 = scmp.ne.s32.totalorder %s88, %s90
    %p97 = scmp.eq.s32.totalorder %s17, 1
    %p98 = por %p96, %p97
    %p99 = scmp.ne.s32.totalorder %s90, %s91
    %p100 = scmp.eq.s32.totalorder %s17, 0
    %p101 = por %p99, %p100
    %p102 = scmp.ne.s32.totalorder %s90, %s91
    %p103 = scmp.eq.s32.totalorder %s18, 1
    %p104 = por %p102, %p103
    %p106 = scmp.ne.s32.totalorder %s91, %s105
    %p107 = scmp.eq.s32.totalorder %s18, 0
    %p108 = por %p106, %p107
    %s110 = sadd.s32 %s109, 1
    %p113 = scmp.eq.s32.totalorder %s12, 1
    %p114 = scmp.ne.s32.totalorder %s109, %s111
    %p115 = scmp.eq.s32.totalorder %s12, 0
    %p116 = por %p114, %p115
    %p117 = scmp.ne.s32.totalorder %s109, %s111
    %p118 = scmp.eq.s32.totalorder %s17, 1
    %p119 = por %p117, %p118
    %p120 = scmp.ne.s32.totalorder %s111, %s112
    %p121 = scmp.eq.s32.totalorder %s17, 0
    %p122 = por %p120, %p121
    %p123 = scmp.ne.s32.totalorder %s111, %s112
    %p124 = scmp.eq.s32.totalorder %s18, 1
    %p125 = por %p123, %p124
    %p127 = scmp.ne.s32.totalorder %s112, %s126
    %p128 = scmp.eq.s32.totalorder %s18, 0
    %p129 = por %p127, %p128
    %s131 = sadd.s32 %s130, 1
    %p134 = scmp.eq.s32.totalorder %s12, 1
    %p135 = scmp.ne.s32.totalorder %s130, %s132
    %p136 = scmp.eq.s32.totalorder %s12, 0
    %p137 = por %p135, %p136
    %p138 = scmp.ne.s32.totalorder %s130, %s132
    %p139 = scmp.eq.s32.totalorder %s17, 1
    %p140 = por %p138, %p139
    %p141 = scmp.ne.s32.totalorder %s132, %s133
    %p142 = scmp.eq.s32.totalorder %s17, 0
    %p143 = por %p141, %p142
    %p144 = scmp.ne.s32.totalorder %s132, %s133
    %p145 = scmp.eq.s32.totalorder %s18, 1
    %p146 = por %p144, %p145
    %p148 = scmp.ne.s32.totalorder %s133, %s147
    %p149 = scmp.eq.s32.totalorder %s18, 0
    %p150 = por %p148, %p149
    %s151 = ssub.s32 %s12, %s19
    %p152 = scmp.eq.s32.totalorder %s151, 0
    %s154 = sadd.s32 %s153, 1
    %s155 = scalar_select %p152, %s153, %s154
    %p158 = pneg %p152
    %p159 = scmp.eq.s32.totalorder %s12, 1
    %p160 = por %p158, %p159
    %p161 = scmp.ne.s32.totalorder %s153, %s156
    %p162 = scmp.eq.s32.totalorder %s12, 0
    %p163 = por %p161, %p162
    %p164 = scmp.ne.s32.totalorder %s153, %s156
    %p165 = scmp.eq.s32.totalorder %s17, 1
    %p166 = por %p164, %p165
    %p167 = scmp.ne.s32.totalorder %s156, %s157
    %p168 = scmp.eq.s32.totalorder %s17, 0
    %p169 = por %p167, %p168
    %p170 = scmp.ne.s32.totalorder %s156, %s157
    %p171 = scmp.eq.s32.totalorder %s18, 1
    %p172 = por %p170, %p171
    %p174 = scmp.ne.s32.totalorder %s157, %s173
    %p175 = scmp.eq.s32.totalorder %s18, 0
    %p176 = por %p174, %p175
    %p177 = scmp.le.s32.totalorder 1, %s12
    %p178 = scmp.lt.s32.totalorder %s12, 3
    %p179 = pnand %p177, %p178
    %p180 = pneg %p179
    // Predicated region
    $region9: #{auto_discretization.1} parent=5 // pred_check
      _
    $region10: #{auto_discretization.1} parent=5 // pred_check_branch
      %182 = sbr.rel (%p179) target = $region12
    $region11: #{auto_discretization.1} parent=5 // pred_region
      %s183 = ssub.s32 %s12, 1
      // Predicated region
      $region13: #{auto_discretization.1} parent=11 // pred_check
        %p184 = pneg %p59
      $region14: #{auto_discretization.1} parent=11 // pred_check_branch
        %186 = sbr.rel (%p184) target = $region16
      $region15: #{auto_discretization.1} parent=11 // pred_region
        _
      $region16: #{auto_discretization.1} parent=11 // pred_fallthru
        _
      // Predicated region
      $region17: #{auto_discretization.1} parent=11 // pred_check
        %p187 = pneg %p80
      $region18: #{auto_discretization.1} parent=11 // pred_check_branch
        %189 = sbr.rel (%p187) target = $region20
      $region19: #{auto_discretization.1} parent=11 // pred_region
        _
      $region20: #{auto_discretization.1} parent=11 // pred_fallthru
        _
      // Predicated region
      $region21: #{auto_discretization.1} parent=11 // pred_check
        %p190 = pneg %p101
      $region22: #{auto_discretization.1} parent=11 // pred_check_branch
        %192 = sbr.rel (%p190) target = $region24
      $region23: #{auto_discretization.1} parent=11 // pred_region
        _
      $region24: #{auto_discretization.1} parent=11 // pred_fallthru
        _
      // Predicated region
      $region25: #{auto_discretization.1} parent=11 // pred_check
        %p193 = pneg %p122
      $region26: #{auto_discretization.1} parent=11 // pred_check_branch
        %195 = sbr.rel (%p193) target = $region28
      $region27: #{auto_discretization.1} parent=11 // pred_region
        _
      $region28: #{auto_discretization.1} parent=11 // pred_fallthru
        _
      // Predicated region
      $region29: #{auto_discretization.1} parent=11 // pred_check
        %p196 = pneg %p143
      $region30: #{auto_discretization.1} parent=11 // pred_check_branch
        %198 = sbr.rel (%p196) target = $region32
      $region31: #{auto_discretization.1} parent=11 // pred_region
        _
      $region32: #{auto_discretization.1} parent=11 // pred_fallthru
        _
    $region12: #{auto_discretization.1} parent=5 // pred_fallthru
      _
    %p199 = scmp.lt.s32.totalorder %s12, 2
    // Predicated region
    $region33: #{auto_discretization.1} parent=5 // pred_check
      %p200 = pneg %p199
    $region34: #{auto_discretization.1} parent=5 // pred_check_branch
      %202 = sbr.rel (%p200) target = $region36
    $region35: #{auto_discretization.1} parent=5 // pred_region
      // Predicated region
      $region37: #{auto_discretization.1} parent=35 // pred_check
        %p203 = pneg %p32
      $region38: #{auto_discretization.1} parent=35 // pred_check_branch
        %205 = sbr.rel (%p203) target = $region40
      $region39: #{auto_discretization.1} parent=35 // pred_region
        %s206 = smul.u32 32, %s12
        %p207 = scmp.lt.s32.totalorder %s206, 63
        %s208 = scalar_select %p207, %s206, 63
        %s209 = smul.addr %s208, 8
        %s210 = scalar_lea.vmem %s0, %s209
        %s211 = smul.u32 32, %s12
      $region40: #{auto_discretization.1} parent=35 // pred_fallthru
        _
    $region36: #{auto_discretization.1} parent=5 // pred_fallthru
      _
    %p212 = scmp.le.s32.totalorder 1, %s12
    %p213 = scmp.lt.s32.totalorder %s12, 3
    %p214 = pnand %p212, %p213
    %p215 = pneg %p214
    // Predicated region
    $region41: #{auto_discretization.1} parent=5 // pred_check
      _
    $region42: #{auto_discretization.1} parent=5 // pred_check_branch
      %217 = sbr.rel (%p214) target = $region44
    $region43: #{auto_discretization.1} parent=5 // pred_region
      %s218 = ssub.s32 %s12, 1
      %s219 = smul.u32 32, %s17
      %p220 = scmp.lt.s32.totalorder %s219, 63
      %s221 = scalar_select %p220, %s219, 63
      %s222 = smul.addr %s221, 8
      %s223 = scalar_lea.vmem %s0, %s222
      %p224 = pneg %p38
      %p225 = pneg %p35
      %p226 = pneg %p59
      %p227 = pneg %p56
      %p228 = pneg %p80
      %p229 = pneg %p77
      %p230 = pneg %p101
      %p231 = pneg %p98
      %p232 = pneg %p122
      %p233 = pneg %p119
      %p234 = pneg %p143
      %p235 = pneg %p140
      %p236 = pneg %p169
      %p237 = pneg %p166
      %s238 = smul.u32 32, %s17
      %p239 = scmp.lt.s32.totalorder %s238, 63
      %s240 = scalar_select %p239, %s238, 63
      %s241 = smul.addr %s240, 8
      %s242 = scalar_lea.vmem %s6, %s241
      %s243 = smul.u32 32, %s17
      %p244 = scmp.lt.s32.totalorder %s243, 63
      %s245 = scalar_select %p244, %s243, 63
      %s246 = smul.addr %s245, 8
      %s247 = scalar_lea.vmem %s0, %s246
      %s248 = smul.u32 32, %s17
      %s249 = smul.u32 32, %s17
      %p250 = scmp.lt.s32.totalorder %s249, 63
      %s251 = scalar_select %p250, %s249, 63
      %s252 = smul.addr %s251, 8
      %s253 = scalar_lea.vmem %s6, %s252
      %s254 = smul.u32 32, %s17
      %v255 = vld [vmem:[%s247] sm:$0xff]
      %v256 = vld [vmem:[%s247 + $0x8] sm:$0xff]
      %v257 = vld [vmem:[%s247 + $0x10] sm:$0xff]
      %v258 = vld [vmem:[%s247 + $0x18] sm:$0xff]
      %v259 = vld [vmem:[%s247 + $0x20] sm:$0xff]
      %v260 = vld [vmem:[%s247 + $0x28] sm:$0xff]
      %v261 = vld [vmem:[%s247 + $0x30] sm:$0xff]
      %v262 = vld [vmem:[%s247 + $0x38] sm:$0xff]
      %v263 = vld [vmem:[%s247 + $0x40] sm:$0xff]
      %v264 = vld [vmem:[%s247 + $0x48] sm:$0xff]
      %v265 = vld [vmem:[%s247 + $0x50] sm:$0xff]
      %v266 = vld [vmem:[%s247 + $0x58] sm:$0xff]
      %v267 = vld [vmem:[%s247 + $0x60] sm:$0xff]
      %v268 = vld [vmem:[%s247 + $0x68] sm:$0xff]
      %v269 = vld [vmem:[%s247 + $0x70] sm:$0xff]
      %v270 = vld [vmem:[%s247 + $0x78] sm:$0xff]
      %v271 = vld [vmem:[%s247 + $0x80] sm:$0xff]
      %v272 = vld [vmem:[%s247 + $0x88] sm:$0xff]
      %v273 = vld [vmem:[%s247 + $0x90] sm:$0xff]
      %v274 = vld [vmem:[%s247 + $0x98] sm:$0xff]
      %v275 = vld [vmem:[%s247 + $0xa0] sm:$0xff]
      %v276 = vld [vmem:[%s247 + $0xa8] sm:$0xff]
      %v277 = vld [vmem:[%s247 + $0xb0] sm:$0xff]
      %v278 = vld [vmem:[%s247 + $0xb8] sm:$0xff]
      %v279 = vld [vmem:[%s247 + $0xc0] sm:$0xff]
      %v280 = vld [vmem:[%s247 + $0xc8] sm:$0xff]
      %v281 = vld [vmem:[%s247 + $0xd0] sm:$0xff]
      %v282 = vld [vmem:[%s247 + $0xd8] sm:$0xff]
      %v283 = vld [vmem:[%s247 + $0xe0] sm:$0xff]
      %v284 = vld [vmem:[%s247 + $0xe8] sm:$0xff]
      %v285 = vld [vmem:[%s247 + $0xf0] sm:$0xff]
      %v286 = vld [vmem:[%s247 + $0xf8] sm:$0xff]
      %v287 = vld [vmem:[%s1] sm:$0x1]
      %289 = vset.pattern.permute.xlu0 0
      %290 = vperm.xlu0 %289, %v255
      %v291 = vpop.permute.xlu0 %290
      %294 = vset.pattern.permute.xlu0 0
      %295 = vperm.xlu0 %294, %v256
      %v296 = vpop.permute.xlu0 %295
      %299 = vset.pattern.permute.xlu0 0
      %300 = vperm.xlu0 %299, %v257
      %v301 = vpop.permute.xlu0 %300
      %304 = vset.pattern.permute.xlu0 0
      %305 = vperm.xlu0 %304, %v258
      %v306 = vpop.permute.xlu0 %305
      %309 = vset.pattern.permute.xlu0 0
      %310 = vperm.xlu0 %309, %v259
      %v311 = vpop.permute.xlu0 %310
      %314 = vset.pattern.permute.xlu0 0
      %315 = vperm.xlu0 %314, %v260
      %v316 = vpop.permute.xlu0 %315
      %319 = vset.pattern.permute.xlu0 0
      %320 = vperm.xlu0 %319, %v261
      %v321 = vpop.permute.xlu0 %320
      %324 = vset.pattern.permute.xlu0 0
      %325 = vperm.xlu0 %324, %v262
      %v326 = vpop.permute.xlu0 %325
      %329 = vset.pattern.permute.xlu0 0
      %330 = vperm.xlu0 %329, %v263
      %v331 = vpop.permute.xlu0 %330
      %334 = vset.pattern.permute.xlu0 0
      %335 = vperm.xlu0 %334, %v264
      %v336 = vpop.permute.xlu0 %335
      %339 = vset.pattern.permute.xlu0 0
      %340 = vperm.xlu0 %339, %v265
      %v341 = vpop.permute.xlu0 %340
      %344 = vset.pattern.permute.xlu0 0
      %345 = vperm.xlu0 %344, %v266
      %v346 = vpop.permute.xlu0 %345
      %349 = vset.pattern.permute.xlu0 0
      %350 = vperm.xlu0 %349, %v267
      %v351 = vpop.permute.xlu0 %350
      %354 = vset.pattern.permute.xlu0 0
      %355 = vperm.xlu0 %354, %v268
      %v356 = vpop.permute.xlu0 %355
      %359 = vset.pattern.permute.xlu0 0
      %360 = vperm.xlu0 %359, %v269
      %v361 = vpop.permute.xlu0 %360
      %364 = vset.pattern.permute.xlu0 0
      %365 = vperm.xlu0 %364, %v270
      %v366 = vpop.permute.xlu0 %365
      %369 = vset.pattern.permute.xlu0 0
      %370 = vperm.xlu0 %369, %v271
      %v371 = vpop.permute.xlu0 %370
      %374 = vset.pattern.permute.xlu0 0
      %375 = vperm.xlu0 %374, %v272
      %v376 = vpop.permute.xlu0 %375
      %379 = vset.pattern.permute.xlu0 0
      %380 = vperm.xlu0 %379, %v273
      %v381 = vpop.permute.xlu0 %380
      %384 = vset.pattern.permute.xlu0 0
      %385 = vperm.xlu0 %384, %v274
      %v386 = vpop.permute.xlu0 %385
      %389 = vset.pattern.permute.xlu0 0
      %390 = vperm.xlu0 %389, %v275
      %v391 = vpop.permute.xlu0 %390
      %394 = vset.pattern.permute.xlu0 0
      %395 = vperm.xlu0 %394, %v276
      %v396 = vpop.permute.xlu0 %395
      %399 = vset.pattern.permute.xlu0 0
      %400 = vperm.xlu0 %399, %v277
      %v401 = vpop.permute.xlu0 %400
      %404 = vset.pattern.permute.xlu0 0
      %405 = vperm.xlu0 %404, %v278
      %v406 = vpop.permute.xlu0 %405
      %409 = vset.pattern.permute.xlu0 0
      %410 = vperm.xlu0 %409, %v279
      %v411 = vpop.permute.xlu0 %410
      %414 = vset.pattern.permute.xlu0 0
      %415 = vperm.xlu0 %414, %v280
      %v416 = vpop.permute.xlu0 %415
      %419 = vset.pattern.permute.xlu0 0
      %420 = vperm.xlu0 %419, %v281
      %v421 = vpop.permute.xlu0 %420
      %424 = vset.pattern.permute.xlu0 0
      %425 = vperm.xlu0 %424, %v282
      %v426 = vpop.permute.xlu0 %425
      %429 = vset.pattern.permute.xlu0 0
      %430 = vperm.xlu0 %429, %v283
      %v431 = vpop.permute.xlu0 %430
      %434 = vset.pattern.permute.xlu0 0
      %435 = vperm.xlu0 %434, %v284
      %v436 = vpop.permute.xlu0 %435
      %439 = vset.pattern.permute.xlu0 0
      %440 = vperm.xlu0 %439, %v285
      %v441 = vpop.permute.xlu0 %440
      %444 = vset.pattern.permute.xlu0 0
      %445 = vperm.xlu0 %444, %v286
      %v446 = vpop.permute.xlu0 %445
      %v449 = vperm.slane %v287, 0
      %v451 = vmul.f32 %v291, %v449
      %v452 = vmul.f32 %v296, %v449
      %v453 = vmul.f32 %v301, %v449
      %v454 = vmul.f32 %v306, %v449
      %v455 = vmul.f32 %v311, %v449
      %v456 = vmul.f32 %v316, %v449
      %v457 = vmul.f32 %v321, %v449
      %v458 = vmul.f32 %v326, %v449
      %v459 = vmul.f32 %v331, %v449
      %v460 = vmul.f32 %v336, %v449
      %v461 = vmul.f32 %v341, %v449
      %v462 = vmul.f32 %v346, %v449
      %v463 = vmul.f32 %v351, %v449
      %v464 = vmul.f32 %v356, %v449
      %v465 = vmul.f32 %v361, %v449
      %v466 = vmul.f32 %v366, %v449
      %v467 = vmul.f32 %v371, %v449
      %v468 = vmul.f32 %v376, %v449
      %v469 = vmul.f32 %v381, %v449
      %v470 = vmul.f32 %v386, %v449
      %v471 = vmul.f32 %v391, %v449
      %v472 = vmul.f32 %v396, %v449
      %v473 = vmul.f32 %v401, %v449
      %v474 = vmul.f32 %v406, %v449
      %v475 = vmul.f32 %v411, %v449
      %v476 = vmul.f32 %v416, %v449
      %v477 = vmul.f32 %v421, %v449
      %v478 = vmul.f32 %v426, %v449
      %v479 = vmul.f32 %v431, %v449
      %v480 = vmul.f32 %v436, %v449
      %v481 = vmul.f32 %v441, %v449
      %v482 = vmul.f32 %v446, %v449
      %v483 = vld [vmem:[%s2] sm:$0x1]
      %v485 = vperm.slane %v483, 0
      %v487 = vadd.f32 %v451, %v485
      %v488 = vadd.f32 %v452, %v485
      %v489 = vadd.f32 %v453, %v485
      %v490 = vadd.f32 %v454, %v485
      %v491 = vadd.f32 %v455, %v485
      %v492 = vadd.f32 %v456, %v485
      %v493 = vadd.f32 %v457, %v485
      %v494 = vadd.f32 %v458, %v485
      %v495 = vadd.f32 %v459, %v485
      %v496 = vadd.f32 %v460, %v485
      %v497 = vadd.f32 %v461, %v485
      %v498 = vadd.f32 %v462, %v485
      %v499 = vadd.f32 %v463, %v485
      %v500 = vadd.f32 %v464, %v485
      %v501 = vadd.f32 %v465, %v485
      %v502 = vadd.f32 %v466, %v485
      %v503 = vadd.f32 %v467, %v485
      %v504 = vadd.f32 %v468, %v485
      %v505 = vadd.f32 %v469, %v485
      %v506 = vadd.f32 %v470, %v485
      %v507 = vadd.f32 %v471, %v485
      %v508 = vadd.f32 %v472, %v485
      %v509 = vadd.f32 %v473, %v485
      %v510 = vadd.f32 %v474, %v485
      %v511 = vadd.f32 %v475, %v485
      %v512 = vadd.f32 %v476, %v485
      %v513 = vadd.f32 %v477, %v485
      %v514 = vadd.f32 %v478, %v485
      %v515 = vadd.f32 %v479, %v485
      %v516 = vadd.f32 %v480, %v485
      %v517 = vadd.f32 %v481, %v485
      %v518 = vadd.f32 %v482, %v485
      %v519 = vmul.f32 %v487, 0.01
      %v520 = vmul.f32 %v488, 0.01
      %v521 = vmul.f32 %v489, 0.01
      %v522 = vmul.f32 %v490, 0.01
      %v523 = vmul.f32 %v491, 0.01
      %v524 = vmul.f32 %v492, 0.01
      %v525 = vmul.f32 %v493, 0.01
      %v526 = vmul.f32 %v494, 0.01
      %v527 = vmul.f32 %v495, 0.01
      %v528 = vmul.f32 %v496, 0.01
      %v529 = vmul.f32 %v497, 0.01
      %v530 = vmul.f32 %v498, 0.01
      %v531 = vmul.f32 %v499, 0.01
      %v532 = vmul.f32 %v500, 0.01
      %v533 = vmul.f32 %v501, 0.01
      %v534 = vmul.f32 %v502, 0.01
      %v535 = vmul.f32 %v503, 0.01
      %v536 = vmul.f32 %v504, 0.01
      %v537 = vmul.f32 %v505, 0.01
      %v538 = vmul.f32 %v506, 0.01
      %v539 = vmul.f32 %v507, 0.01
      %v540 = vmul.f32 %v508, 0.01
      %v541 = vmul.f32 %v509, 0.01
      %v542 = vmul.f32 %v510, 0.01
      %v543 = vmul.f32 %v511, 0.01
      %v544 = vmul.f32 %v512, 0.01
      %v545 = vmul.f32 %v513, 0.01
      %v546 = vmul.f32 %v514, 0.01
      %v547 = vmul.f32 %v515, 0.01
      %v548 = vmul.f32 %v516, 0.01
      %v549 = vmul.f32 %v517, 0.01
      %v550 = vmul.f32 %v518, 0.01
      %v551 = vmax.f32 %v487, %v519
      %v552 = vmax.f32 %v488, %v520
      %v553 = vmax.f32 %v489, %v521
      %v554 = vmax.f32 %v490, %v522
      %v555 = vmax.f32 %v491, %v523
      %v556 = vmax.f32 %v492, %v524
      %v557 = vmax.f32 %v493, %v525
      %v558 = vmax.f32 %v494, %v526
      %v559 = vmax.f32 %v495, %v527
      %v560 = vmax.f32 %v496, %v528
      %v561 = vmax.f32 %v497, %v529
      %v562 = vmax.f32 %v498, %v530
      %v563 = vmax.f32 %v499, %v531
      %v564 = vmax.f32 %v500, %v532
      %v565 = vmax.f32 %v501, %v533
      %v566 = vmax.f32 %v502, %v534
      %v567 = vmax.f32 %v503, %v535
      %v568 = vmax.f32 %v504, %v536
      %v569 = vmax.f32 %v505, %v537
      %v570 = vmax.f32 %v506, %v538
      %v571 = vmax.f32 %v507, %v539
      %v572 = vmax.f32 %v508, %v540
      %v573 = vmax.f32 %v509, %v541
      %v574 = vmax.f32 %v510, %v542
      %v575 = vmax.f32 %v511, %v543
      %v576 = vmax.f32 %v512, %v544
      %v577 = vmax.f32 %v513, %v545
      %v578 = vmax.f32 %v514, %v546
      %v579 = vmax.f32 %v515, %v547
      %v580 = vmax.f32 %v516, %v548
      %v581 = vmax.f32 %v517, %v549
      %v582 = vmax.f32 %v518, %v550
      %v583 = vpack.c.bf16 %v552, %v551
      %v584 = vpack.c.bf16 %v554, %v553
      %v585 = vpack.c.bf16 %v556, %v555
      %v586 = vpack.c.bf16 %v558, %v557
      %v587 = vpack.c.bf16 %v560, %v559
      %v588 = vpack.c.bf16 %v562, %v561
      %v589 = vpack.c.bf16 %v564, %v563
      %v590 = vpack.c.bf16 %v566, %v565
      %v591 = vpack.c.bf16 %v568, %v567
      %v592 = vpack.c.bf16 %v570, %v569
      %v593 = vpack.c.bf16 %v572, %v571
      %v594 = vpack.c.bf16 %v574, %v573
      %v595 = vpack.c.bf16 %v576, %v575
      %v596 = vpack.c.bf16 %v578, %v577
      %v597 = vpack.c.bf16 %v580, %v579
      %v598 = vpack.c.bf16 %v582, %v581
      %v599 = vld [vmem:[%s3] sm:$0xf]
      %v600 = vld [vmem:[%s3 + $0x4] sm:$0xf]
      %v601 = vld [vmem:[%s3 + $0x8] sm:$0xf]
      %v602 = vld [vmem:[%s3 + $0xc] sm:$0xf]
      %v603 = vld [vmem:[%s3 + $0x10] sm:$0xf]
      %v604 = vld [vmem:[%s3 + $0x14] sm:$0xf]
      %v605 = vld [vmem:[%s3 + $0x18] sm:$0xf]
      %v606 = vld [vmem:[%s3 + $0x1c] sm:$0xf]
      %v607 = vld [vmem:[%s3 + $0x20] sm:$0xf]
      %v608 = vld [vmem:[%s3 + $0x24] sm:$0xf]
      %v609 = vld [vmem:[%s3 + $0x28] sm:$0xf]
      %v610 = vld [vmem:[%s3 + $0x2c] sm:$0xf]
      %v611 = vld [vmem:[%s3 + $0x30] sm:$0xf]
      %v612 = vld [vmem:[%s3 + $0x34] sm:$0xf]
      %v613 = vld [vmem:[%s3 + $0x38] sm:$0xf]
      %v614 = vld [vmem:[%s3 + $0x3c] sm:$0xf]
      %v615 = vld [vmem:[%s4] sm:$0x1]
      %v617 = vperm.slane %v615, 0
      %v635 = vunpack.c.l.b16 %v599
      %v636 = vunpack.c.l.b16 %v600
      %v637 = vunpack.c.l.b16 %v601
      %v638 = vunpack.c.l.b16 %v602
      %v639 = vunpack.c.l.b16 %v603
      %v640 = vunpack.c.l.b16 %v604
      %v641 = vunpack.c.l.b16 %v605
      %v642 = vunpack.c.l.b16 %v606
      %v643 = vunpack.c.l.b16 %v607
      %v644 = vunpack.c.l.b16 %v608
      %v645 = vunpack.c.l.b16 %v609
      %v646 = vunpack.c.l.b16 %v610
      %v647 = vunpack.c.l.b16 %v611
      %v648 = vunpack.c.l.b16 %v612
      %v649 = vunpack.c.l.b16 %v613
      %v650 = vunpack.c.l.b16 %v614
      %v651 = vpack.c.b16 %v636, %v635
      %v652 = vpack.c.b16 %v638, %v637
      %v653 = vpack.c.b16 %v640, %v639
      %v654 = vpack.c.b16 %v642, %v641
      %v655 = vpack.c.b16 %v644, %v643
      %v656 = vpack.c.b16 %v646, %v645
      %v657 = vpack.c.b16 %v648, %v647
      %v658 = vpack.c.b16 %v650, %v649
      %667 = vmatpush.bf16.msra.mxu0 %v658
      %668 = vmatpush.bf16.msra.mxu0 %v657
      %669 = vmatpush.bf16.msra.mxu0 %v656
      %670 = vmatpush.bf16.msra.mxu0 %v655
      %671 = vmatpush.bf16.msra.mxu0 %v654
      %672 = vmatpush.bf16.msra.mxu0 %v653
      %673 = vmatpush.bf16.msra.mxu0 %v652
      %674 = vmatpush.bf16.msra.mxu0 %v651
      %675 = vmatmul.bf16.gmra.mxu0 %v583
      %v676 = vpop.f32.mrf.mxu0
      %v677 = vadd.f32 %v617, %v676
      %v678 = vpop.f32.mrf.mxu0
      %v679 = vadd.f32 %v617, %v678
      %680 = vmatmul.bf16.gmra.mxu0 %v584
      %v681 = vpop.f32.mrf.mxu0
      %v682 = vadd.f32 %v617, %v681
      %v683 = vpop.f32.mrf.mxu0
      %v684 = vadd.f32 %v617, %v683
      %685 = vmatmul.bf16.gmra.mxu0 %v585
      %v686 = vpop.f32.mrf.mxu0
      %v687 = vadd.f32 %v617, %v686
      %v688 = vpop.f32.mrf.mxu0
      %v689 = vadd.f32 %v617, %v688
      %690 = vmatmul.bf16.gmra.mxu0 %v586
      %v691 = vpop.f32.mrf.mxu0
      %v692 = vadd.f32 %v617, %v691
      %v693 = vpop.f32.mrf.mxu0
      %v694 = vadd.f32 %v617, %v693
      %695 = vmatmul.bf16.gmra.mxu0 %v587
      %v696 = vpop.f32.mrf.mxu0
      %v697 = vadd.f32 %v617, %v696
      %v698 = vpop.f32.mrf.mxu0
      %v699 = vadd.f32 %v617, %v698
      %700 = vmatmul.bf16.gmra.mxu0 %v588
      %v701 = vpop.f32.mrf.mxu0
      %v702 = vadd.f32 %v617, %v701
      %v703 = vpop.f32.mrf.mxu0
      %v704 = vadd.f32 %v617, %v703
      %705 = vmatmul.bf16.gmra.mxu0 %v589
      %v706 = vpop.f32.mrf.mxu0
      %v707 = vadd.f32 %v617, %v706
      %v708 = vpop.f32.mrf.mxu0
      %v709 = vadd.f32 %v617, %v708
      %710 = vmatmul.bf16.gmra.mxu0 %v590
      %v711 = vpop.f32.mrf.mxu0
      %v712 = vadd.f32 %v617, %v711
      %v713 = vpop.f32.mrf.mxu0
      %v714 = vadd.f32 %v617, %v713
      %715 = vmatmul.bf16.gmra.mxu0 %v591
      %v716 = vpop.f32.mrf.mxu0
      %v717 = vadd.f32 %v617, %v716
      %v718 = vpop.f32.mrf.mxu0
      %v719 = vadd.f32 %v617, %v718
      %720 = vmatmul.bf16.gmra.mxu0 %v592
      %v721 = vpop.f32.mrf.mxu0
      %v722 = vadd.f32 %v617, %v721
      %v723 = vpop.f32.mrf.mxu0
      %v724 = vadd.f32 %v617, %v723
      %725 = vmatmul.bf16.gmra.mxu0 %v593
      %v726 = vpop.f32.mrf.mxu0
      %v727 = vadd.f32 %v617, %v726
      %v728 = vpop.f32.mrf.mxu0
      %v729 = vadd.f32 %v617, %v728
      %730 = vmatmul.bf16.gmra.mxu0 %v594
      %v731 = vpop.f32.mrf.mxu0
      %v732 = vadd.f32 %v617, %v731
      %v733 = vpop.f32.mrf.mxu0
      %v734 = vadd.f32 %v617, %v733
      %735 = vmatmul.bf16.gmra.mxu0 %v595
      %v736 = vpop.f32.mrf.mxu0
      %v737 = vadd.f32 %v617, %v736
      %v738 = vpop.f32.mrf.mxu0
      %v739 = vadd.f32 %v617, %v738
      %740 = vmatmul.bf16.gmra.mxu0 %v596
      %v741 = vpop.f32.mrf.mxu0
      %v742 = vadd.f32 %v617, %v741
      %v743 = vpop.f32.mrf.mxu0
      %v744 = vadd.f32 %v617, %v743
      %745 = vmatmul.bf16.gmra.mxu0 %v597
      %v746 = vpop.f32.mrf.mxu0
      %v747 = vadd.f32 %v617, %v746
      %v748 = vpop.f32.mrf.mxu0
      %v749 = vadd.f32 %v617, %v748
      %750 = vmatmul.bf16.gmra.mxu0 %v598
      %v751 = vpop.f32.mrf.mxu0
      %v752 = vadd.f32 %v617, %v751
      %v753 = vpop.f32.mrf.mxu0
      %v754 = vadd.f32 %v617, %v753
      %755 = vdwg.mxu0
      %756 = vmax.xlane.f32.xlu0 %v677
      %v757 = vpop.xlane.xlu0 %756
      %758 = vmax.xlane.f32.xlu0 %v679
      %v759 = vpop.xlane.xlu0 %758
      %760 = vmax.xlane.f32.xlu0 %v682
      %v761 = vpop.xlane.xlu0 %760
      %762 = vmax.xlane.f32.xlu0 %v684
      %v763 = vpop.xlane.xlu0 %762
      %764 = vmax.xlane.f32.xlu0 %v687
      %v765 = vpop.xlane.xlu0 %764
      %766 = vmax.xlane.f32.xlu0 %v689
      %v767 = vpop.xlane.xlu0 %766
      %768 = vmax.xlane.f32.xlu0 %v692
      %v769 = vpop.xlane.xlu0 %768
      %770 = vmax.xlane.f32.xlu0 %v694
      %v771 = vpop.xlane.xlu0 %770
      %772 = vmax.xlane.f32.xlu0 %v697
      %v773 = vpop.xlane.xlu0 %772
      %774 = vmax.xlane.f32.xlu0 %v699
      %v775 = vpop.xlane.xlu0 %774
      %776 = vmax.xlane.f32.xlu0 %v702
      %v777 = vpop.xlane.xlu0 %776
      %778 = vmax.xlane.f32.xlu0 %v704
      %v779 = vpop.xlane.xlu0 %778
      %780 = vmax.xlane.f32.xlu0 %v707
      %v781 = vpop.xlane.xlu0 %780
      %782 = vmax.xlane.f32.xlu0 %v709
      %v783 = vpop.xlane.xlu0 %782
      %784 = vmax.xlane.f32.xlu0 %v712
      %v785 = vpop.xlane.xlu0 %784
      %786 = vmax.xlane.f32.xlu0 %v714
      %v787 = vpop.xlane.xlu0 %786
      %788 = vmax.xlane.f32.xlu0 %v717
      %v789 = vpop.xlane.xlu0 %788
      %790 = vmax.xlane.f32.xlu0 %v719
      %v791 = vpop.xlane.xlu0 %790
      %792 = vmax.xlane.f32.xlu0 %v722
      %v793 = vpop.xlane.xlu0 %792
      %794 = vmax.xlane.f32.xlu0 %v724
      %v795 = vpop.xlane.xlu0 %794
      %796 = vmax.xlane.f32.xlu0 %v727
      %v797 = vpop.xlane.xlu0 %796
      %798 = vmax.xlane.f32.xlu0 %v729
      %v799 = vpop.xlane.xlu0 %798
      %800 = vmax.xlane.f32.xlu0 %v732
      %v801 = vpop.xlane.xlu0 %800
      %802 = vmax.xlane.f32.xlu0 %v734
      %v803 = vpop.xlane.xlu0 %802
      %804 = vmax.xlane.f32.xlu0 %v737
      %v805 = vpop.xlane.xlu0 %804
      %806 = vmax.xlane.f32.xlu0 %v739
      %v807 = vpop.xlane.xlu0 %806
      %808 = vmax.xlane.f32.xlu0 %v742
      %v809 = vpop.xlane.xlu0 %808
      %810 = vmax.xlane.f32.xlu0 %v744
      %v811 = vpop.xlane.xlu0 %810
      %812 = vmax.xlane.f32.xlu0 %v747
      %v813 = vpop.xlane.xlu0 %812
      %814 = vmax.xlane.f32.xlu0 %v749
      %v815 = vpop.xlane.xlu0 %814
      %816 = vmax.xlane.f32.xlu0 %v752
      %v817 = vpop.xlane.xlu0 %816
      %818 = vmax.xlane.f32.xlu0 %v754
      %v819 = vpop.xlane.xlu0 %818
      %v820 = vsub.f32 %v677, %v757
      %v821 = vsub.f32 %v679, %v759
      %v822 = vsub.f32 %v682, %v761
      %v823 = vsub.f32 %v684, %v763
      %v824 = vsub.f32 %v687, %v765
      %v825 = vsub.f32 %v689, %v767
      %v826 = vsub.f32 %v692, %v769
      %v827 = vsub.f32 %v694, %v771
      %v828 = vsub.f32 %v697, %v773
      %v829 = vsub.f32 %v699, %v775
      %v830 = vsub.f32 %v702, %v777
      %v831 = vsub.f32 %v704, %v779
      %v832 = vsub.f32 %v707, %v781
      %v833 = vsub.f32 %v709, %v783
      %v834 = vsub.f32 %v712, %v785
      %v835 = vsub.f32 %v714, %v787
      %v836 = vsub.f32 %v717, %v789
      %v837 = vsub.f32 %v719, %v791
      %v838 = vsub.f32 %v722, %v793
      %v839 = vsub.f32 %v724, %v795
      %v840 = vsub.f32 %v727, %v797
      %v841 = vsub.f32 %v729, %v799
      %v842 = vsub.f32 %v732, %v801
      %v843 = vsub.f32 %v734, %v803
      %v844 = vsub.f32 %v737, %v805
      %v845 = vsub.f32 %v739, %v807
      %v846 = vsub.f32 %v742, %v809
      %v847 = vsub.f32 %v744, %v811
      %v848 = vsub.f32 %v747, %v813
      %v849 = vsub.f32 %v749, %v815
      %v850 = vsub.f32 %v752, %v817
      %v851 = vsub.f32 %v754, %v819
      %v852 = vmul.f32 %v820, 1.442695
      %v853 = vpow.pop %v852
      %v854 = vmul.f32 %v821, 1.442695
      %v855 = vpow.pop %v854
      %v856 = vmul.f32 %v822, 1.442695
      %v857 = vpow.pop %v856
      %v858 = vmul.f32 %v823, 1.442695
      %v859 = vpow.pop %v858
      %v860 = vmul.f32 %v824, 1.442695
      %v861 = vpow.pop %v860
      %v862 = vmul.f32 %v825, 1.442695
      %v863 = vpow.pop %v862
      %v864 = vmul.f32 %v826, 1.442695
      %v865 = vpow.pop %v864
      %v866 = vmul.f32 %v827, 1.442695
      %v867 = vpow.pop %v866
      %v868 = vmul.f32 %v828, 1.442695
      %v869 = vpow.pop %v868
      %v870 = vmul.f32 %v829, 1.442695
      %v871 = vpow.pop %v870
      %v872 = vmul.f32 %v830, 1.442695
      %v873 = vpow.pop %v872
      %v874 = vmul.f32 %v831, 1.442695
      %v875 = vpow.pop %v874
      %v876 = vmul.f32 %v832, 1.442695
      %v877 = vpow.pop %v876
      %v878 = vmul.f32 %v833, 1.442695
      %v879 = vpow.pop %v878
      %v880 = vmul.f32 %v834, 1.442695
      %v881 = vpow.pop %v880
      %v882 = vmul.f32 %v835, 1.442695
      %v883 = vpow.pop %v882
      %v884 = vmul.f32 %v836, 1.442695
      %v885 = vpow.pop %v884
      %v886 = vmul.f32 %v837, 1.442695
      %v887 = vpow.pop %v886
      %v888 = vmul.f32 %v838, 1.442695
      %v889 = vpow.pop %v888
      %v890 = vmul.f32 %v839, 1.442695
      %v891 = vpow.pop %v890
      %v892 = vmul.f32 %v840, 1.442695
      %v893 = vpow.pop %v892
      %v894 = vmul.f32 %v841, 1.442695
      %v895 = vpow.pop %v894
      %v896 = vmul.f32 %v842, 1.442695
      %v897 = vpow.pop %v896
      %v898 = vmul.f32 %v843, 1.442695
      %v899 = vpow.pop %v898
      %v900 = vmul.f32 %v844, 1.442695
      %v901 = vpow.pop %v900
      %v902 = vmul.f32 %v845, 1.442695
      %v903 = vpow.pop %v902
      %v904 = vmul.f32 %v846, 1.442695
      %v905 = vpow.pop %v904
      %v906 = vmul.f32 %v847, 1.442695
      %v907 = vpow.pop %v906
      %v908 = vmul.f32 %v848, 1.442695
      %v909 = vpow.pop %v908
      %v910 = vmul.f32 %v849, 1.442695
      %v911 = vpow.pop %v910
      %v912 = vmul.f32 %v850, 1.442695
      %v913 = vpow.pop %v912
      %v914 = vmul.f32 %v851, 1.442695
      %v915 = vpow.pop %v914
      %916 = vadd.xlane.f32.xlu0 %v853
      %v917 = vpop.xlane.xlu0 %916
      %918 = vadd.xlane.f32.xlu0 %v855
      %v919 = vpop.xlane.xlu0 %918
      %920 = vadd.xlane.f32.xlu0 %v857
      %v921 = vpop.xlane.xlu0 %920
      %922 = vadd.xlane.f32.xlu0 %v859
      %v923 = vpop.xlane.xlu0 %922
      %924 = vadd.xlane.f32.xlu0 %v861
      %v925 = vpop.xlane.xlu0 %924
      %926 = vadd.xlane.f32.xlu0 %v863
      %v927 = vpop.xlane.xlu0 %926
      %928 = vadd.xlane.f32.xlu0 %v865
      %v929 = vpop.xlane.xlu0 %928
      %930 = vadd.xlane.f32.xlu0 %v867
      %v931 = vpop.xlane.xlu0 %930
      %932 = vadd.xlane.f32.xlu0 %v869
      %v933 = vpop.xlane.xlu0 %932
      %934 = vadd.xlane.f32.xlu0 %v871
      %v935 = vpop.xlane.xlu0 %934
      %936 = vadd.xlane.f32.xlu0 %v873
      %v937 = vpop.xlane.xlu0 %936
      %938 = vadd.xlane.f32.xlu0 %v875
      %v939 = vpop.xlane.xlu0 %938
      %940 = vadd.xlane.f32.xlu0 %v877
      %v941 = vpop.xlane.xlu0 %940
      %942 = vadd.xlane.f32.xlu0 %v879
      %v943 = vpop.xlane.xlu0 %942
      %944 = vadd.xlane.f32.xlu0 %v881
      %v945 = vpop.xlane.xlu0 %944
      %946 = vadd.xlane.f32.xlu0 %v883
      %v947 = vpop.xlane.xlu0 %946
      %948 = vadd.xlane.f32.xlu0 %v885
      %v949 = vpop.xlane.xlu0 %948
      %950 = vadd.xlane.f32.xlu0 %v887
      %v951 = vpop.xlane.xlu0 %950
      %952 = vadd.xlane.f32.xlu0 %v889
      %v953 = vpop.xlane.xlu0 %952
      %954 = vadd.xlane.f32.xlu0 %v891
      %v955 = vpop.xlane.xlu0 %954
      %956 = vadd.xlane.f32.xlu0 %v893
      %v957 = vpop.xlane.xlu0 %956
      %958 = vadd.xlane.f32.xlu0 %v895
      %v959 = vpop.xlane.xlu0 %958
      %960 = vadd.xlane.f32.xlu0 %v897
      %v961 = vpop.xlane.xlu0 %960
      %962 = vadd.xlane.f32.xlu0 %v899
      %v963 = vpop.xlane.xlu0 %962
      %964 = vadd.xlane.f32.xlu0 %v901
      %v965 = vpop.xlane.xlu0 %964
      %966 = vadd.xlane.f32.xlu0 %v903
      %v967 = vpop.xlane.xlu0 %966
      %968 = vadd.xlane.f32.xlu0 %v905
      %v969 = vpop.xlane.xlu0 %968
      %970 = vadd.xlane.f32.xlu0 %v907
      %v971 = vpop.xlane.xlu0 %970
      %972 = vadd.xlane.f32.xlu0 %v909
      %v973 = vpop.xlane.xlu0 %972
      %974 = vadd.xlane.f32.xlu0 %v911
      %v975 = vpop.xlane.xlu0 %974
      %976 = vadd.xlane.f32.xlu0 %v913
      %v977 = vpop.xlane.xlu0 %976
      %978 = vadd.xlane.f32.xlu0 %v915
      %v979 = vpop.xlane.xlu0 %978
      %v980 = vpack.c.bf16 %v855, %v853
      %v981 = vpack.c.bf16 %v859, %v857
      %v982 = vpack.c.bf16 %v863, %v861
      %v983 = vpack.c.bf16 %v867, %v865
      %v984 = vpack.c.bf16 %v871, %v869
      %v985 = vpack.c.bf16 %v875, %v873
      %v986 = vpack.c.bf16 %v879, %v877
      %v987 = vpack.c.bf16 %v883, %v881
      %v988 = vpack.c.bf16 %v887, %v885
      %v989 = vpack.c.bf16 %v891, %v889
      %v990 = vpack.c.bf16 %v895, %v893
      %v991 = vpack.c.bf16 %v899, %v897
      %v992 = vpack.c.bf16 %v903, %v901
      %v993 = vpack.c.bf16 %v907, %v905
      %v994 = vpack.c.bf16 %v911, %v909
      %v995 = vpack.c.bf16 %v915, %v913
      %v996 = vld [vmem:[%s5] sm:$0xf]
      %v997 = vld [vmem:[%s5 + $0x4] sm:$0xf]
      %v998 = vld [vmem:[%s5 + $0x8] sm:$0xf]
      %v999 = vld [vmem:[%s5 + $0xc] sm:$0xf]
      %v1000 = vld [vmem:[%s5 + $0x10] sm:$0xf]
      %v1001 = vld [vmem:[%s5 + $0x14] sm:$0xf]
      %v1002 = vld [vmem:[%s5 + $0x18] sm:$0xf]
      %v1003 = vld [vmem:[%s5 + $0x1c] sm:$0xf]
      %v1004 = vld [vmem:[%s5 + $0x20] sm:$0xf]
      %v1005 = vld [vmem:[%s5 + $0x24] sm:$0xf]
      %v1006 = vld [vmem:[%s5 + $0x28] sm:$0xf]
      %v1007 = vld [vmem:[%s5 + $0x2c] sm:$0xf]
      %v1008 = vld [vmem:[%s5 + $0x30] sm:$0xf]
      %v1009 = vld [vmem:[%s5 + $0x34] sm:$0xf]
      %v1010 = vld [vmem:[%s5 + $0x38] sm:$0xf]
      %v1011 = vld [vmem:[%s5 + $0x3c] sm:$0xf]
      %v1028 = vunpack.c.l.b16 %v996
      %v1029 = vunpack.c.l.b16 %v997
      %v1030 = vunpack.c.l.b16 %v998
      %v1031 = vunpack.c.l.b16 %v999
      %v1032 = vunpack.c.l.b16 %v1000
      %v1033 = vunpack.c.l.b16 %v1001
      %v1034 = vunpack.c.l.b16 %v1002
      %v1035 = vunpack.c.l.b16 %v1003
      %v1036 = vunpack.c.l.b16 %v1004
      %v1037 = vunpack.c.l.b16 %v1005
      %v1038 = vunpack.c.l.b16 %v1006
      %v1039 = vunpack.c.l.b16 %v1007
      %v1040 = vunpack.c.l.b16 %v1008
      %v1041 = vunpack.c.l.b16 %v1009
      %v1042 = vunpack.c.l.b16 %v1010
      %v1043 = vunpack.c.l.b16 %v1011
      %v1044 = vpack.c.b16 %v1029, %v1028
      %v1045 = vpack.c.b16 %v1031, %v1030
      %v1046 = vpack.c.b16 %v1033, %v1032
      %v1047 = vpack.c.b16 %v1035, %v1034
      %v1048 = vpack.c.b16 %v1037, %v1036
      %v1049 = vpack.c.b16 %v1039, %v1038
      %v1050 = vpack.c.b16 %v1041, %v1040
      %v1051 = vpack.c.b16 %v1043, %v1042
      %1060 = vmatpush.bf16.msra.mxu0 %v1051
      %1061 = vmatpush.bf16.msra.mxu0 %v1050
      %1062 = vmatpush.bf16.msra.mxu0 %v1049
      %1063 = vmatpush.bf16.msra.mxu0 %v1048
      %1064 = vmatpush.bf16.msra.mxu0 %v1047
      %1065 = vmatpush.bf16.msra.mxu0 %v1046
      %1066 = vmatpush.bf16.msra.mxu0 %v1045
      %1067 = vmatpush.bf16.msra.mxu0 %v1044
      %1068 = vmatmul.bf16.gmra.mxu0 %v980
      %v1069 = vpop.f32.mrf.mxu0
      %v1070 = vadd.f32 0.0, %v1069
      %v1071 = vpop.f32.mrf.mxu0
      %v1072 = vadd.f32 0.0, %v1071
      %1073 = vmatmul.bf16.gmra.mxu0 %v981
      %v1074 = vpop.f32.mrf.mxu0
      %v1075 = vadd.f32 0.0, %v1074
      %v1076 = vpop.f32.mrf.mxu0
      %v1077 = vadd.f32 0.0, %v1076
      %1078 = vmatmul.bf16.gmra.mxu0 %v982
      %v1079 = vpop.f32.mrf.mxu0
      %v1080 = vadd.f32 0.0, %v1079
      %v1081 = vpop.f32.mrf.mxu0
      %v1082 = vadd.f32 0.0, %v1081
      %1083 = vmatmul.bf16.gmra.mxu0 %v983
      %v1084 = vpop.f32.mrf.mxu0
      %v1085 = vadd.f32 0.0, %v1084
      %v1086 = vpop.f32.mrf.mxu0
      %v1087 = vadd.f32 0.0, %v1086
      %1088 = vmatmul.bf16.gmra.mxu0 %v984
      %v1089 = vpop.f32.mrf.mxu0
      %v1090 = vadd.f32 0.0, %v1089
      %v1091 = vpop.f32.mrf.mxu0
      %v1092 = vadd.f32 0.0, %v1091
      %1093 = vmatmul.bf16.gmra.mxu0 %v985
      %v1094 = vpop.f32.mrf.mxu0
      %v1095 = vadd.f32 0.0, %v1094
      %v1096 = vpop.f32.mrf.mxu0
      %v1097 = vadd.f32 0.0, %v1096
      %1098 = vmatmul.bf16.gmra.mxu0 %v986
      %v1099 = vpop.f32.mrf.mxu0
      %v1100 = vadd.f32 0.0, %v1099
      %v1101 = vpop.f32.mrf.mxu0
      %v1102 = vadd.f32 0.0, %v1101
      %1103 = vmatmul.bf16.gmra.mxu0 %v987
      %v1104 = vpop.f32.mrf.mxu0
      %v1105 = vadd.f32 0.0, %v1104
      %v1106 = vpop.f32.mrf.mxu0
      %v1107 = vadd.f32 0.0, %v1106
      %1108 = vmatmul.bf16.gmra.mxu0 %v988
      %v1109 = vpop.f32.mrf.mxu0
      %v1110 = vadd.f32 0.0, %v1109
      %v1111 = vpop.f32.mrf.mxu0
      %v1112 = vadd.f32 0.0, %v1111
      %1113 = vmatmul.bf16.gmra.mxu0 %v989
      %v1114 = vpop.f32.mrf.mxu0
      %v1115 = vadd.f32 0.0, %v1114
      %v1116 = vpop.f32.mrf.mxu0
      %v1117 = vadd.f32 0.0, %v1116
      %1118 = vmatmul.bf16.gmra.mxu0 %v990
      %v1119 = vpop.f32.mrf.mxu0
      %v1120 = vadd.f32 0.0, %v1119
      %v1121 = vpop.f32.mrf.mxu0
      %v1122 = vadd.f32 0.0, %v1121
      %1123 = vmatmul.bf16.gmra.mxu0 %v991
      %v1124 = vpop.f32.mrf.mxu0
      %v1125 = vadd.f32 0.0, %v1124
      %v1126 = vpop.f32.mrf.mxu0
      %v1127 = vadd.f32 0.0, %v1126
      %1128 = vmatmul.bf16.gmra.mxu0 %v992
      %v1129 = vpop.f32.mrf.mxu0
      %v1130 = vadd.f32 0.0, %v1129
      %v1131 = vpop.f32.mrf.mxu0
      %v1132 = vadd.f32 0.0, %v1131
      %1133 = vmatmul.bf16.gmra.mxu0 %v993
      %v1134 = vpop.f32.mrf.mxu0
      %v1135 = vadd.f32 0.0, %v1134
      %v1136 = vpop.f32.mrf.mxu0
      %v1137 = vadd.f32 0.0, %v1136
      %1138 = vmatmul.bf16.gmra.mxu0 %v994
      %v1139 = vpop.f32.mrf.mxu0
      %v1140 = vadd.f32 0.0, %v1139
      %v1141 = vpop.f32.mrf.mxu0
      %v1142 = vadd.f32 0.0, %v1141
      %1143 = vmatmul.bf16.gmra.mxu0 %v995
      %v1144 = vpop.f32.mrf.mxu0
      %v1145 = vadd.f32 0.0, %v1144
      %v1146 = vpop.f32.mrf.mxu0
      %v1147 = vadd.f32 0.0, %v1146
      %1148 = vdwg.mxu0
      %v1149 = vrcp.pop %v917
      %v1150 = vrcp.pop %v919
      %v1151 = vrcp.pop %v921
      %v1152 = vrcp.pop %v923
      %v1153 = vrcp.pop %v925
      %v1154 = vrcp.pop %v927
      %v1155 = vrcp.pop %v929
      %v1156 = vrcp.pop %v931
      %v1157 = vrcp.pop %v933
      %v1158 = vrcp.pop %v935
      %v1159 = vrcp.pop %v937
      %v1160 = vrcp.pop %v939
      %v1161 = vrcp.pop %v941
      %v1162 = vrcp.pop %v943
      %v1163 = vrcp.pop %v945
      %v1164 = vrcp.pop %v947
      %v1165 = vrcp.pop %v949
      %v1166 = vrcp.pop %v951
      %v1167 = vrcp.pop %v953
      %v1168 = vrcp.pop %v955
      %v1169 = vrcp.pop %v957
      %v1170 = vrcp.pop %v959
      %v1171 = vrcp.pop %v961
      %v1172 = vrcp.pop %v963
      %v1173 = vrcp.pop %v965
      %v1174 = vrcp.pop %v967
      %v1175 = vrcp.pop %v969
      %v1176 = vrcp.pop %v971
      %v1177 = vrcp.pop %v973
      %v1178 = vrcp.pop %v975
      %v1179 = vrcp.pop %v977
      %v1180 = vrcp.pop %v979
      %v1181 = vmul.f32 %v1070, %v1149
      %v1182 = vmul.f32 %v1072, %v1150
      %v1183 = vmul.f32 %v1075, %v1151
      %v1184 = vmul.f32 %v1077, %v1152
      %v1185 = vmul.f32 %v1080, %v1153
      %v1186 = vmul.f32 %v1082, %v1154
      %v1187 = vmul.f32 %v1085, %v1155
      %v1188 = vmul.f32 %v1087, %v1156
      %v1189 = vmul.f32 %v1090, %v1157
      %v1190 = vmul.f32 %v1092, %v1158
      %v1191 = vmul.f32 %v1095, %v1159
      %v1192 = vmul.f32 %v1097, %v1160
      %v1193 = vmul.f32 %v1100, %v1161
      %v1194 = vmul.f32 %v1102, %v1162
      %v1195 = vmul.f32 %v1105, %v1163
      %v1196 = vmul.f32 %v1107, %v1164
      %v1197 = vmul.f32 %v1110, %v1165
      %v1198 = vmul.f32 %v1112, %v1166
      %v1199 = vmul.f32 %v1115, %v1167
      %v1200 = vmul.f32 %v1117, %v1168
      %v1201 = vmul.f32 %v1120, %v1169
      %v1202 = vmul.f32 %v1122, %v1170
      %v1203 = vmul.f32 %v1125, %v1171
      %v1204 = vmul.f32 %v1127, %v1172
      %v1205 = vmul.f32 %v1130, %v1173
      %v1206 = vmul.f32 %v1132, %v1174
      %v1207 = vmul.f32 %v1135, %v1175
      %v1208 = vmul.f32 %v1137, %v1176
      %v1209 = vmul.f32 %v1140, %v1177
      %v1210 = vmul.f32 %v1142, %v1178
      %v1211 = vmul.f32 %v1145, %v1179
      %v1212 = vmul.f32 %v1147, %v1180
      %vm1213 = vcmask 523264
      %1214 = vst.msk [vmem:[%s253] sm:$0xff] %vm1213, %v1181
      %1215 = vst.msk [vmem:[%s253 + $0x8] sm:$0xff] %vm1213, %v1182
      %1216 = vst.msk [vmem:[%s253 + $0x10] sm:$0xff] %vm1213, %v1183
      %1217 = vst.msk [vmem:[%s253 + $0x18] sm:$0xff] %vm1213, %v1184
      %1218 = vst.msk [vmem:[%s253 + $0x20] sm:$0xff] %vm1213, %v1185
      %1219 = vst.msk [vmem:[%s253 + $0x28] sm:$0xff] %vm1213, %v1186
      %1220 = vst.msk [vmem:[%s253 + $0x30] sm:$0xff] %vm1213, %v1187
      %1221 = vst.msk [vmem:[%s253 + $0x38] sm:$0xff] %vm1213, %v1188
      %1222 = vst.msk [vmem:[%s253 + $0x40] sm:$0xff] %vm1213, %v1189
      %1223 = vst.msk [vmem:[%s253 + $0x48] sm:$0xff] %vm1213, %v1190
      %1224 = vst.msk [vmem:[%s253 + $0x50] sm:$0xff] %vm1213, %v1191
      %1225 = vst.msk [vmem:[%s253 + $0x58] sm:$0xff] %vm1213, %v1192
      %1226 = vst.msk [vmem:[%s253 + $0x60] sm:$0xff] %vm1213, %v1193
      %1227 = vst.msk [vmem:[%s253 + $0x68] sm:$0xff] %vm1213, %v1194
      %1228 = vst.msk [vmem:[%s253 + $0x70] sm:$0xff] %vm1213, %v1195
      %1229 = vst.msk [vmem:[%s253 + $0x78] sm:$0xff] %vm1213, %v1196
      %1230 = vst.msk [vmem:[%s253 + $0x80] sm:$0xff] %vm1213, %v1197
      %1231 = vst.msk [vmem:[%s253 + $0x88] sm:$0xff] %vm1213, %v1198
      %1232 = vst.msk [vmem:[%s253 + $0x90] sm:$0xff] %vm1213, %v1199
      %1233 = vst.msk [vmem:[%s253 + $0x98] sm:$0xff] %vm1213, %v1200
      %1234 = vst.msk [vmem:[%s253 + $0xa0] sm:$0xff] %vm1213, %v1201
      %1235 = vst.msk [vmem:[%s253 + $0xa8] sm:$0xff] %vm1213, %v1202
      %1236 = vst.msk [vmem:[%s253 + $0xb0] sm:$0xff] %vm1213, %v1203
      %1237 = vst.msk [vmem:[%s253 + $0xb8] sm:$0xff] %vm1213, %v1204
      %1238 = vst.msk [vmem:[%s253 + $0xc0] sm:$0xff] %vm1213, %v1205
      %1239 = vst.msk [vmem:[%s253 + $0xc8] sm:$0xff] %vm1213, %v1206
      %1240 = vst.msk [vmem:[%s253 + $0xd0] sm:$0xff] %vm1213, %v1207
      %1241 = vst.msk [vmem:[%s253 + $0xd8] sm:$0xff] %vm1213, %v1208
      %1242 = vst.msk [vmem:[%s253 + $0xe0] sm:$0xff] %vm1213, %v1209
      %1243 = vst.msk [vmem:[%s253 + $0xe8] sm:$0xff] %vm1213, %v1210
      %1244 = vst.msk [vmem:[%s253 + $0xf0] sm:$0xff] %vm1213, %v1211
      %1245 = vst.msk [vmem:[%s253 + $0xf8] sm:$0xff] %vm1213, %v1212
      %s1246 = smul.u32 32, %s17
      %p1247 = scmp.lt.s32.totalorder %s1246, 63
      %s1248 = scalar_select %p1247, %s1246, 63
      %s1249 = smul.addr %s1248, 8
      %s1250 = scalar_lea.vmem %s6, %s1249
      // Predicated region
      $region45: #{auto_discretization.1} parent=43 // pred_check
        %p1251 = pneg %p166
      $region46: #{auto_discretization.1} parent=43 // pred_check_branch
        %1253 = sbr.rel (%p1251) target = $region48
      $region47: #{auto_discretization.1} parent=43 // pred_region
        %s1254 = smul.u32 32, %s17
      $region48: #{auto_discretization.1} parent=43 // pred_fallthru
        _
    $region44: #{auto_discretization.1} parent=5 // pred_fallthru
      _
    %p1255 = scmp.le.s32.totalorder 2, %s12
    // Predicated region
    $region49: #{auto_discretization.1} parent=5 // pred_check
      %p1256 = pneg %p1255
    $region50: #{auto_discretization.1} parent=5 // pred_check_branch
      %1258 = sbr.rel (%p1256) target = $region52
    $region51: #{auto_discretization.1} parent=5 // pred_region
      %s1259 = ssub.s32 %s12, 2
      // Predicated region
      $region53: #{auto_discretization.1} parent=51 // pred_check
        %p1260 = pneg %p172
      $region54: #{auto_discretization.1} parent=51 // pred_check_branch
        %1262 = sbr.rel (%p1260) target = $region56
      $region55: #{auto_discretization.1} parent=51 // pred_region
        %s1263 = smul.u32 32, %s18
        %p1264 = scmp.lt.s32.totalorder %s1263, 63
        %s1265 = scalar_select %p1264, %s1263, 63
        %s1266 = smul.addr %s1265, 8
        %s1267 = scalar_lea.vmem %s6, %s1266
      $region56: #{auto_discretization.1} parent=51 // pred_fallthru
        _
    $region52: #{auto_discretization.1} parent=5 // pred_fallthru
      _
  $region6: #{auto_discretization.1} parent=0 // loop_footer
    %s16 = sadd.s32 1, %s12
  $region7: #{auto_discretization.1} parent=0 // loop_footer_branch
    %11 = sbr.rel target = $region3
  $region8: #{auto_discretization.1} parent=0 // loop_exit
    _

</llo_original>
